<compile_context>
chip_gen: v7x
topology: tpu7x:2x2x1
jax: 0.10.0
libtpu: 0.0.40
codegen_flags: <defaults>
</compile_context>

<pallas_src>
import functools

import jax
import jax.numpy as jnp
from jax import lax
from jax.experimental import pallas as pl
from jax.experimental.pallas import tpu as pltpu

_LANES = 128


def _ce_surv_kernel(logits_ref, targets_ref, out_ref, *,
                    reduction, eps, n_valid, tile_n, ragged):
    i = pl.program_id(0)

    # (TN, M) native dtype -> f32 -> lane-dense (M, TN): batch on the lane axis,
    # intervals on the sublane axis.
    x = jnp.transpose(logits_ref[...].astype(jnp.float32), (1, 0))      # (M, TN)
    m, tn = x.shape

    # sigmoid via tanh: a single EUP transcendental instead of exp + reciprocal.
    hazards = jnp.clip(0.5 * jnp.tanh(0.5 * x) + 0.5, eps, 1.0 - eps)   # (M, TN)

    targets = targets_ref[...]                                          # (1, TN) int32

    # Static-unrolled recurrence over the M intervals; each step is a few lane-dense
    # (1, TN) VPU ops.  Matches the reference's direct cumprod bit-for-bit style
    # (no exp/log round trip), needs no MXU and no cross-sublane scan.
    surv_prev = jnp.ones((1, tn), jnp.float32)      # prod_{k<j} (1 - h_k)
    p_sum = jnp.zeros((1, tn), jnp.float32)
    chosen_event = jnp.zeros((1, tn), jnp.float32)
    for j in range(m):
        h_j = hazards[j:j + 1, :]                   # (1, TN)
        p_event_j = h_j * surv_prev                 # P(event in interval j)
        p_sum = p_sum + p_event_j
        chosen_event = jnp.where(targets == j, p_event_j, chosen_event)
        surv_prev = surv_prev * (1.0 - h_j)

    p_no_event = surv_prev                          # prod over all intervals
    p_sum = jnp.maximum(p_sum + p_no_event, eps)
    chosen = jnp.where(targets == m, p_no_event, chosen_event)
    chosen = jnp.maximum(chosen / p_sum, eps)
    ce = -jnp.log(chosen)                           # (1, TN)

    if reduction == 'none':
        # Lane-dense (1, TN) block of the (1, N) output; OOB tail columns of a ragged
        # last tile are clipped by Pallas on writeback.
        out_ref[...] = ce
    else:
        if ragged:
            col = lax.broadcasted_iota(jnp.int32, ce.shape, 1)
            ce = jnp.where(i * tile_n + col < n_valid, ce, 0.0)
        partial = jnp.sum(ce, axis=1, keepdims=True)                    # (1, 1)
        lane = lax.broadcasted_iota(jnp.int32, (1, _LANES), 1)
        # Per-tile partial sum into lane 0 of this tile's own (1, 128) output block;
        # the grid stays "parallel" (no cross-tile accumulator).
        out_ref[...] = jnp.where(lane == 0,
                                 jnp.broadcast_to(partial, (1, _LANES)), 0.0)


def _pick_tile_n(n, m, in_itemsize):
    """Batch-tile rows per grid step, sized against a v7x-safe VMEM budget."""
    budget = 16 * 1024 * 1024
    # double-buffered native-dtype input + a few live (M, TN) f32 intermediates
    # + lane-dense (1, TN) accumulator rows / targets.
    bytes_per_row = 2 * m * in_itemsize + 6 * m * 4 + 12 * 4
    tn = budget // bytes_per_row
    tn = max(_LANES, min(int(tn), 32768))
    return (tn // _LANES) * _LANES


def cross_entropy_surv_loss(logits, event_times, censoring, *,
                            eps=1e-7, reduction='mean', tile_n=None):
    """Pallas TPU implementation of CrossEntropySurvLoss.forward."""
    if reduction not in ('mean', 'sum', 'none'):
        raise ValueError(f"unknown reduction: {reduction}")
    N, M = logits.shape

    # Single lane-dense (1, N) int32 side input:
    # target = event interval if uncensored, else M ("no event" bucket).
    event_times = event_times.astype(jnp.int32)
    censoring = censoring.astype(jnp.int32)
    targets = jnp.where(censoring == 1, event_times,
                        jnp.full_like(event_times, M)).reshape(1, N)

    if tile_n is None:
        tn = _pick_tile_n(N, M, jnp.dtype(logits.dtype).itemsize)
    else:
        tn = max(_LANES, (int(tile_n) // _LANES) * _LANES)
    if N <= tn:
        tn = N                      # single tile: all blocks == full array dims
    num_tiles = pl.cdiv(N, tn)
    ragged = (N % tn) != 0

    in_specs = [
        pl.BlockSpec((tn, M), lambda i: (i, 0)),    # logits, native dtype (bf16 ok)
        pl.BlockSpec((1, tn), lambda i: (0, i)),    # targets, lane-dense int32
    ]

    if reduction == 'none':
        out_shape = jax.ShapeDtypeStruct((1, N), jnp.float32)
        out_spec = pl.BlockSpec((1, tn), lambda i: (0, i))
    else:
        # One lane-dense (1, 128) partial-sum block per tile; finished in the wrapper.
        out_shape = jax.ShapeDtypeStruct((1, num_tiles * _LANES), jnp.float32)
        out_spec = pl.BlockSpec((1, _LANES), lambda i: (0, i))

    kernel = functools.partial(
        _ce_surv_kernel, reduction=reduction, eps=float(eps),
        n_valid=int(N), tile_n=int(tn), ragged=bool(ragged))

    out = pl.pallas_call(
        kernel,
        out_shape=out_shape,
        grid=(num_tiles,),
        in_specs=in_specs,
        out_specs=out_spec,
        compiler_params=pltpu.CompilerParams(
            dimension_semantics=("parallel",),
            vmem_limit_bytes=32 * 1024 * 1024),
    )(logits, targets)

    if reduction == 'none':
        return out[0, :]
    total = jnp.sum(out)
    if reduction == 'mean':
        return total / N
    return total


def _reference(logits, event_times, censoring, eps=1e-7, reduction='mean'):
    """Pure-JAX reference mirroring the PyTorch forward."""
    N, M = logits.shape
    h = jnp.clip(jax.nn.sigmoid(logits.astype(jnp.float32)), eps, 1.0 - eps)
    survival = jnp.cumprod(1.0 - h, axis=1)
    survival_padded = jnp.concatenate([jnp.ones((N, 1), h.dtype), survival], axis=1)
    p_event = h * survival_padded[:, :-1]
    p_no_event = survival[:, -1:]
    p_dist = jnp.concatenate([p_event, p_no_event], axis=1)
    p_sum = jnp.maximum(jnp.sum(p_dist, axis=1, keepdims=True), eps)
    p_dist = p_dist / p_sum
    targets = jnp.where(censoring == 1, event_times, M).astype(jnp.int32)
    chosen = jnp.take_along_axis(p_dist, targets[:, None], axis=1)
    chosen = jnp.maximum(chosen, eps)
    ce = -jnp.log(chosen)[:, 0]
    if reduction == 'mean':
        return ce.mean()
    if reduction == 'sum':
        return ce.sum()
    return ce


if __name__ == "__main__":
    key = jax.random.PRNGKey(0)
    k1, k2, k3 = jax.random.split(key, 3)

    # base case: single tile, batch of 16 samples, 8 discrete survival intervals
    N, M = 16, 8
    logits = jax.random.normal(k1, (N, M), dtype=jnp.float32)
    event_times = jax.random.randint(k2, (N,), 0, M, dtype=jnp.int32)
    censoring = jax.random.bernoulli(k3, 0.6, (N,)).astype(jnp.int32)

    for red in ('mean', 'sum', 'none'):
        got = jax.block_until_ready(
            cross_entropy_surv_loss(logits, event_times, censoring, reduction=red))
        want = _reference(logits, event_times, censoring, reduction=red)
        assert jnp.allclose(got, want, rtol=1e-5, atol=1e-6), (red, got, want)

    # multi-tile + ragged-last-tile path (grid > 1, masked tail rows)
    N2, M2 = 300, 12
    k4, k5, k6 = jax.random.split(jax.random.PRNGKey(1), 3)
    logits2 = jax.random.normal(k4, (N2, M2), dtype=jnp.float32)
    et2 = jax.random.randint(k5, (N2,), 0, M2, dtype=jnp.int32)
    cz2 = jax.random.bernoulli(k6, 0.5, (N2,)).astype(jnp.int32)
    for red in ('mean', 'sum', 'none'):
        got = jax.block_until_ready(
            cross_entropy_surv_loss(logits2, et2, cz2, reduction=red, tile_n=128))
        want = _reference(logits2, et2, cz2, reduction=red)
        assert jnp.allclose(got, want, rtol=1e-5, atol=1e-5), (red, got, want)

    # bf16 logits stream through HBM in native dtype; compute is f32 in-kernel
    logits_bf16 = logits.astype(jnp.bfloat16)
    got_bf16 = jax.block_until_ready(
        cross_entropy_surv_loss(logits_bf16, event_times, censoring, reduction='mean'))
    want_bf16 = _reference(logits_bf16.astype(jnp.float32), event_times, censoring,
                           reduction='mean')
    assert jnp.allclose(got_bf16, want_bf16, rtol=1e-5, atol=1e-6), (got_bf16, want_bf16)

    print("KERNEL_OK")
</pallas_src>

<mosaic_0001>
module attributes {stable_mosaic.version = 11 : i64} {
  func.func @_ce_surv_kernel(%arg0: i32, %arg1: memref<16x8xf32, #tpu.memory_space<vmem>>, %arg2: memref<1x16xi32, #tpu.memory_space<vmem>>, %arg3: memref<1x128xf32, #tpu.memory_space<vmem>>) attributes {dimension_semantics = [#tpu.dimension_semantics<parallel>], iteration_bounds = array<i64: 1>, scalar_prefetch = 0 : i64, scratch_operands = 0 : i64, tpu.core_type = #tpu.core_type<tc>, window_params = [{transform_indices = @transform_0, window_bounds = array<i64: 16, 8>}, {transform_indices = @transform_1, window_bounds = array<i64: 1, 16>}, {transform_indices = @transform_2, window_bounds = array<i64: 1, 128>}]} {
    %c0 = arith.constant 0 : index
    %c0_0 = arith.constant 0 : index
    %0 = vector.load %arg1[%c0, %c0_0] : memref<16x8xf32, #tpu.memory_space<vmem>>, vector<16x8xf32>
    %1 = tpu.transpose %0, [1, 0] : vector<16x8xf32> -> vector<8x16xf32>
    %cst = arith.constant 5.000000e-01 : f32
    %2 = vector.broadcast %cst : f32 to vector<8x16xf32>
    %3 = arith.mulf %2, %1 : vector<8x16xf32>
    %4 = math.tanh %3 : vector<8x16xf32>
    %cst_1 = arith.constant 5.000000e-01 : f32
    %5 = vector.broadcast %cst_1 : f32 to vector<8x16xf32>
    %6 = arith.mulf %5, %4 : vector<8x16xf32>
    %cst_2 = arith.constant 5.000000e-01 : f32
    %7 = vector.broadcast %cst_2 : f32 to vector<8x16xf32>
    %8 = arith.addf %6, %7 : vector<8x16xf32>
    %cst_3 = arith.constant 1.000000e-07 : f32
    %cst_4 = arith.constant 0.99999988 : f32
    %9 = vector.broadcast %cst_3 : f32 to vector<8x16xf32>
    %10 = arith.maximumf %9, %8 : vector<8x16xf32>
    %11 = vector.broadcast %cst_4 : f32 to vector<8x16xf32>
    %12 = arith.minimumf %11, %10 : vector<8x16xf32>
    %c0_5 = arith.constant 0 : index
    %c0_6 = arith.constant 0 : index
    %13 = vector.load %arg2[%c0_5, %c0_6] : memref<1x16xi32, #tpu.memory_space<vmem>>, vector<1x16xi32>
    %cst_7 = arith.constant 1.000000e+00 : f32
    %14 = vector.broadcast %cst_7 : f32 to vector<1x16xf32>
    %cst_8 = arith.constant 0.000000e+00 : f32
    %15 = vector.broadcast %cst_8 : f32 to vector<1x16xf32>
    %cst_9 = arith.constant 0.000000e+00 : f32
    %16 = vector.broadcast %cst_9 : f32 to vector<1x16xf32>
    %17 = vector.extract_strided_slice %12 {offsets = [0, 0], sizes = [1, 16], strides = [1, 1]} : vector<8x16xf32> to vector<1x16xf32>
    %18 = arith.mulf %17, %14 : vector<1x16xf32>
    %19 = arith.addf %15, %18 : vector<1x16xf32>
    %c0_i32 = arith.constant 0 : i32
    %20 = vector.broadcast %c0_i32 : i32 to vector<1x16xi32>
    %21 = arith.cmpi eq, %13, %20 : vector<1x16xi32>
    %22 = arith.select %21, %18, %16 : vector<1x16xi1>, vector<1x16xf32>
    %cst_10 = arith.constant 1.000000e+00 : f32
    %23 = vector.broadcast %cst_10 : f32 to vector<1x16xf32>
    %24 = arith.subf %23, %17 : vector<1x16xf32>
    %25 = arith.mulf %14, %24 : vector<1x16xf32>
    %26 = vector.extract_strided_slice %12 {offsets = [1, 0], sizes = [1, 16], strides = [1, 1]} : vector<8x16xf32> to vector<1x16xf32>
    %27 = arith.mulf %26, %25 : vector<1x16xf32>
    %28 = arith.addf %19, %27 : vector<1x16xf32>
    %c1_i32 = arith.constant 1 : i32
    %29 = vector.broadcast %c1_i32 : i32 to vector<1x16xi32>
    %30 = arith.cmpi eq, %13, %29 : vector<1x16xi32>
    %31 = arith.select %30, %27, %22 : vector<1x16xi1>, vector<1x16xf32>
    %cst_11 = arith.constant 1.000000e+00 : f32
    %32 = vector.broadcast %cst_11 : f32 to vector<1x16xf32>
    %33 = arith.subf %32, %26 : vector<1x16xf32>
    %34 = arith.mulf %25, %33 : vector<1x16xf32>
    %35 = vector.extract_strided_slice %12 {offsets = [2, 0], sizes = [1, 16], strides = [1, 1]} : vector<8x16xf32> to vector<1x16xf32>
    %36 = arith.mulf %35, %34 : vector<1x16xf32>
    %37 = arith.addf %28, %36 : vector<1x16xf32>
    %c2_i32 = arith.constant 2 : i32
    %38 = vector.broadcast %c2_i32 : i32 to vector<1x16xi32>
    %39 = arith.cmpi eq, %13, %38 : vector<1x16xi32>
    %40 = arith.select %39, %36, %31 : vector<1x16xi1>, vector<1x16xf32>
    %cst_12 = arith.constant 1.000000e+00 : f32
    %41 = vector.broadcast %cst_12 : f32 to vector<1x16xf32>
    %42 = arith.subf %41, %35 : vector<1x16xf32>
    %43 = arith.mulf %34, %42 : vector<1x16xf32>
    %44 = vector.extract_strided_slice %12 {offsets = [3, 0], sizes = [1, 16], strides = [1, 1]} : vector<8x16xf32> to vector<1x16xf32>
    %45 = arith.mulf %44, %43 : vector<1x16xf32>
    %46 = arith.addf %37, %45 : vector<1x16xf32>
    %c3_i32 = arith.constant 3 : i32
    %47 = vector.broadcast %c3_i32 : i32 to vector<1x16xi32>
    %48 = arith.cmpi eq, %13, %47 : vector<1x16xi32>
    %49 = arith.select %48, %45, %40 : vector<1x16xi1>, vector<1x16xf32>
    %cst_13 = arith.constant 1.000000e+00 : f32
    %50 = vector.broadcast %cst_13 : f32 to vector<1x16xf32>
    %51 = arith.subf %50, %44 : vector<1x16xf32>
    %52 = arith.mulf %43, %51 : vector<1x16xf32>
    %53 = vector.extract_strided_slice %12 {offsets = [4, 0], sizes = [1, 16], strides = [1, 1]} : vector<8x16xf32> to vector<1x16xf32>
    %54 = arith.mulf %53, %52 : vector<1x16xf32>
    %55 = arith.addf %46, %54 : vector<1x16xf32>
    %c4_i32 = arith.constant 4 : i32
    %56 = vector.broadcast %c4_i32 : i32 to vector<1x16xi32>
    %57 = arith.cmpi eq, %13, %56 : vector<1x16xi32>
    %58 = arith.select %57, %54, %49 : vector<1x16xi1>, vector<1x16xf32>
    %cst_14 = arith.constant 1.000000e+00 : f32
    %59 = vector.broadcast %cst_14 : f32 to vector<1x16xf32>
    %60 = arith.subf %59, %53 : vector<1x16xf32>
    %61 = arith.mulf %52, %60 : vector<1x16xf32>
    %62 = vector.extract_strided_slice %12 {offsets = [5, 0], sizes = [1, 16], strides = [1, 1]} : vector<8x16xf32> to vector<1x16xf32>
    %63 = arith.mulf %62, %61 : vector<1x16xf32>
    %64 = arith.addf %55, %63 : vector<1x16xf32>
    %c5_i32 = arith.constant 5 : i32
    %65 = vector.broadcast %c5_i32 : i32 to vector<1x16xi32>
    %66 = arith.cmpi eq, %13, %65 : vector<1x16xi32>
    %67 = arith.select %66, %63, %58 : vector<1x16xi1>, vector<1x16xf32>
    %cst_15 = arith.constant 1.000000e+00 : f32
    %68 = vector.broadcast %cst_15 : f32 to vector<1x16xf32>
    %69 = arith.subf %68, %62 : vector<1x16xf32>
    %70 = arith.mulf %61, %69 : vector<1x16xf32>
    %71 = vector.extract_strided_slice %12 {offsets = [6, 0], sizes = [1, 16], strides = [1, 1]} : vector<8x16xf32> to vector<1x16xf32>
    %72 = arith.mulf %71, %70 : vector<1x16xf32>
    %73 = arith.addf %64, %72 : vector<1x16xf32>
    %c6_i32 = arith.constant 6 : i32
    %74 = vector.broadcast %c6_i32 : i32 to vector<1x16xi32>
    %75 = arith.cmpi eq, %13, %74 : vector<1x16xi32>
    %76 = arith.select %75, %72, %67 : vector<1x16xi1>, vector<1x16xf32>
    %cst_16 = arith.constant 1.000000e+00 : f32
    %77 = vector.broadcast %cst_16 : f32 to vector<1x16xf32>
    %78 = arith.subf %77, %71 : vector<1x16xf32>
    %79 = arith.mulf %70, %78 : vector<1x16xf32>
    %80 = vector.extract_strided_slice %12 {offsets = [7, 0], sizes = [1, 16], strides = [1, 1]} : vector<8x16xf32> to vector<1x16xf32>
    %81 = arith.mulf %80, %79 : vector<1x16xf32>
    %82 = arith.addf %73, %81 : vector<1x16xf32>
    %c7_i32 = arith.constant 7 : i32
    %83 = vector.broadcast %c7_i32 : i32 to vector<1x16xi32>
    %84 = arith.cmpi eq, %13, %83 : vector<1x16xi32>
    %85 = arith.select %84, %81, %76 : vector<1x16xi1>, vector<1x16xf32>
    %cst_17 = arith.constant 1.000000e+00 : f32
    %86 = vector.broadcast %cst_17 : f32 to vector<1x16xf32>
    %87 = arith.subf %86, %80 : vector<1x16xf32>
    %88 = arith.mulf %79, %87 : vector<1x16xf32>
    %89 = arith.addf %82, %88 : vector<1x16xf32>
    %cst_18 = arith.constant 1.000000e-07 : f32
    %90 = vector.broadcast %cst_18 : f32 to vector<1x16xf32>
    %91 = arith.maximumf %89, %90 : vector<1x16xf32>
    %c8_i32 = arith.constant 8 : i32
    %92 = vector.broadcast %c8_i32 : i32 to vector<1x16xi32>
    %93 = arith.cmpi eq, %13, %92 : vector<1x16xi32>
    %94 = arith.select %93, %88, %85 : vector<1x16xi1>, vector<1x16xf32>
    %95 = arith.divf %94, %91 : vector<1x16xf32>
    %cst_19 = arith.constant 1.000000e-07 : f32
    %96 = vector.broadcast %cst_19 : f32 to vector<1x16xf32>
    %97 = arith.maximumf %95, %96 : vector<1x16xf32>
    %98 = math.log %97 : vector<1x16xf32>
    %cst_20 = arith.constant 0.000000e+00 : f32
    %99 = vector.broadcast %cst_20 : f32 to vector<1x16xf32>
    %100 = arith.subf %99, %98 : vector<1x16xf32>
    %cst_21 = arith.constant dense<0.000000e+00> : vector<1xf32>
    %101 = vector.multi_reduction <add>, %100, %cst_21 [1] : vector<1x16xf32> to vector<1xf32>
    %102 = vector.shape_cast %101 : vector<1xf32> to vector<1x1xf32>
    %103 = tpu.iota {dimensions = array<i32: 1>} : vector<1x128xi32>
    %c0_i32_22 = arith.constant 0 : i32
    %104 = vector.broadcast %c0_i32_22 : i32 to vector<1x128xi32>
    %105 = arith.cmpi eq, %103, %104 : vector<1x128xi32>
    %106 = vector.shape_cast %102 : vector<1x1xf32> to vector<1x1xf32>
    %107 = vector.broadcast %106 : vector<1x1xf32> to vector<1x128xf32>
    %cst_23 = arith.constant 0.000000e+00 : f32
    %108 = vector.broadcast %cst_23 : f32 to vector<1x128xf32>
    %109 = arith.select %105, %107, %108 : vector<1x128xi1>, vector<1x128xf32>
    %c0_24 = arith.constant 0 : index
    %c0_25 = arith.constant 0 : index
    %110 = vector.load %arg3[%c0_24, %c0_25] : memref<1x128xf32, #tpu.memory_space<vmem>>, vector<1x128xf32>
    tpu.vector_store %arg3[%c0_24, %c0_25], %109 {strides = array<i32>} : memref<1x128xf32, #tpu.memory_space<vmem>>, vector<1x128xf32>,
    return
  }
  func.func @transform_0(%arg0: i32) -> (i32, i32) {
    %c0_i32 = arith.constant 0 : i32
    %c0_i32_0 = arith.constant 0 : i32
    return %arg0, %c0_i32 : i32, i32
  }
  func.func @transform_1(%arg0: i32) -> (i32, i32) {
    %c0_i32 = arith.constant 0 : i32
    %c0_i32_0 = arith.constant 0 : i32
    return %c0_i32, %arg0 : i32, i32
  }
  func.func @transform_2(%arg0: i32) -> (i32, i32) {
    %c0_i32 = arith.constant 0 : i32
    %c0_i32_0 = arith.constant 0 : i32
    return %c0_i32, %arg0 : i32, i32
  }
}

</mosaic_0001>

<llo_original>
// kernel: tpu_custom_call.1
$region0: #{tpu_custom_call.1}
  #allocation0 [shape = 'u32[]', space=smem, size = 0x4, offset = 0x4, fixed_abs, tag = 'smem constant byte address 0x4 - core index']
  #allocation1 [shape = 'u32[144,128]{1,0:T(1,128)}', space=vmem, size = 0x12000, scoped, tag = 'internal scratch']
  %s0 = inlined_call_operand.vmem [shape: f32[16,8], index: 0, kind: input, shape index: {}]
  %s1 = inlined_call_operand.vmem [shape: s32[1,16], index: 1, kind: input, shape index: {}]
  %s2 = inlined_call_operand.hbm [shape: f32[1,128], index: 2, kind: output, shape index: {}]
  %s3 = sld [smem:[#allocation0]]
  $region18: #{tpu_custom_call.1} parent=0
    _
  %s5 = ssub.s32 1, %s3
  %s6 = scalar_select 0, %s5, %s3
  $region1: #{tpu_custom_call.1} parent=0
    #allocation2 [shape = 'u8[512]{0}', space=vmem, size = 0x400, scoped, tag = 'output window, operand 0, single buffered']
    #allocation3 [shape = 's32[1]{0}', space=sflag, size = 0x4, scoped, tag = 'scoped memory for tpu_custom_call.1']
    %7 = vsyncpa [#allocation3], 0
    // Predicated region
    $region2: #{tpu_custom_call.1} parent=1 // pred_check
      _
    $region3: #{tpu_custom_call.1} parent=1 // pred_check_branch
      %9 = sbr.rel (0) target = $region5
    $region4: #{tpu_custom_call.1} parent=1 // pred_region
      _
    $region5: #{tpu_custom_call.1} parent=1 // pred_fallthru
      _
    // Predicated region
    $region6: #{tpu_custom_call.1} parent=1 // pred_check
      _
    $region7: #{tpu_custom_call.1} parent=1 // pred_check_branch
      %11 = sbr.rel (0) target = $region9
    $region8: #{tpu_custom_call.1} parent=1 // pred_region
      _
    $region9: #{tpu_custom_call.1} parent=1 // pred_fallthru
      _
    %v12 = vld [vmem:[%s0] sm:$0xff]
    %v13 = vld [vmem:[%s0 + $0x8] sm:$0xff]
    %14 = vxpose.xlu0.b32.start [1/16] %v12, 128
    %15 = vxpose.xlu0.b32.cont [2/16] %v13, 128
    %16 = vxpose.xlu0.b32.cont [3/16] 0.0, 128
    %17 = vxpose.xlu0.b32.cont [4/16] 0.0, 128
    %18 = vxpose.xlu0.b32.cont [5/16] 0.0, 128
    %19 = vxpose.xlu0.b32.cont [6/16] 0.0, 128
    %20 = vxpose.xlu0.b32.cont [7/16] 0.0, 128
    %21 = vxpose.xlu0.b32.cont [8/16] 0.0, 128
    %22 = vxpose.xlu0.b32.cont [9/16] 0.0, 128
    %23 = vxpose.xlu0.b32.cont [10/16] 0.0, 128
    %24 = vxpose.xlu0.b32.cont [11/16] 0.0, 128
    %25 = vxpose.xlu0.b32.cont [12/16] 0.0, 128
    %26 = vxpose.xlu0.b32.cont [13/16] 0.0, 128
    %27 = vxpose.xlu0.b32.cont [14/16] 0.0, 128
    %28 = vxpose.xlu0.b32.cont [15/16] 0.0, 128
    %29 = vxpose.xlu0.b32.end [16/16] 0.0, 128
    %v30 = vpop.trf.xlu0
    %v31 = vpop.trf.xlu0
    %v32 = vpop.trf.xlu0
    %v33 = vpop.trf.xlu0
    %v34 = vpop.trf.xlu0
    %v35 = vpop.trf.xlu0
    %v36 = vpop.trf.xlu0
    %v37 = vpop.trf.xlu0
    %v38 = vpop.trf.xlu0
    %v39 = vpop.trf.xlu0
    %v40 = vpop.trf.xlu0
    %v41 = vpop.trf.xlu0
    %v42 = vpop.trf.xlu0
    %v43 = vpop.trf.xlu0
    %v44 = vpop.trf.xlu0
    %v45 = vpop.trf.xlu0
    %v46 = vmul.f32 %v30, 0.5
    %v47 = vtanh.pop %v46
    %v48 = vmul.f32 %v47, 0.5
    %v49 = vadd.f32 %v48, 0.5
    %v50 = vmax.f32 %v49, 1e-07
    %v51 = vmin.f32 %v50, 0.9999999
    %v52 = vld [vmem:[%s1] sm:$0x1]
    %v53 = vadd.f32 %v51, 0.0
    %vm54 = vcmp.eq.s32.totalorder %v52, 0
    %v55 = vsel %vm54, %v51, 0.0
    %v56 = vsub.f32 1.0, %v51
    %v58 = vrot.slane %v56, 7
    %v60 = vmul.f32 %v51, %v58
    %v62 = vrot.slane %v60, 1
    %v64 = vadd.f32 %v53, %v62
    %vm65 = vcmp.eq.s32.totalorder %v52, 1
    %v67 = vunpack.c.l.s4 1966171168
    %v68 = vunpack.c.0.s8 %v67
    %v69 = vlaneseq
    %v70 = vshrl.u32 %v69, 7
    %v71 = vsub.s32 %v68, %v70
    %v72 = vrot.slane %v60, %v71
    %v73 = vcombine.high %v72, %v72
    %v75 = vunpack.c.l.s4 1966171168
    %v76 = vunpack.c.0.s8 %v75
    %v77 = vlaneseq
    %v78 = vshrl.u32 %v77, 7
    %v79 = vsub.s32 %v76, %v78
    %v80 = vrot.slane %v73, %v79
    %v82 = vsel %vm65, %v80, %v55
    %v83 = vrot.slane %v56, 1
    %v85 = vmul.f32 %v56, %v83
    %v87 = vrot.slane %v85, 6
    %v89 = vmul.f32 %v51, %v87
    %v91 = vrot.slane %v89, 2
    %v93 = vadd.f32 %v64, %v91
    %vm94 = vcmp.eq.s32.totalorder %v52, 2
    %v96 = vunpack.c.l.s4 1966171168
    %v97 = vunpack.c.0.s8 %v96
    %v98 = vlaneseq
    %v99 = vshrl.u32 %v98, 7
    %v100 = vsub.s32 %v97, %v99
    %v101 = vrot.slane %v89, %v100
    %v103 = vunpack.c.l.s4 1966171168
    %v104 = vunpack.c.0.s8 %v103
    %v105 = vlaneseq
    %v106 = vshrl.u32 %v105, 7
    %v107 = vsub.s32 %v104, %v106
    %v108 = vrot.slane %v101, %v107
    %v109 = vcombine.high %v108, %v108
    %v111 = vsel %vm94, %v109, %v82
    %v112 = vrot.slane %v56, 2
    %v114 = vmul.f32 %v85, %v112
    %v116 = vrot.slane %v114, 5
    %v118 = vmul.f32 %v51, %v116
    %v120 = vrot.slane %v118, 3
    %v122 = vadd.f32 %v93, %v120
    %vm123 = vcmp.eq.s32.totalorder %v52, 3
    %v125 = vunpack.c.l.s4 1966171168
    %v126 = vunpack.c.0.s8 %v125
    %v127 = vlaneseq
    %v128 = vshrl.u32 %v127, 7
    %v129 = vsub.s32 %v126, %v128
    %v130 = vrot.slane %v118, %v129
    %v131 = vcombine.high %v130, %v130
    %v133 = vunpack.c.l.s4 1966171168
    %v134 = vunpack.c.0.s8 %v133
    %v135 = vlaneseq
    %v136 = vshrl.u32 %v135, 7
    %v137 = vsub.s32 %v134, %v136
    %v138 = vrot.slane %v131, %v137
    %v139 = vcombine.high %v138, %v138
    %v141 = vsel %vm123, %v139, %v111
    %v142 = vrot.slane %v56, 3
    %v144 = vmul.f32 %v114, %v142
    %v146 = vrot.slane %v144, 4
    %v148 = vmul.f32 %v51, %v146
    %v150 = vrot.slane %v148, 4
    %v152 = vadd.f32 %v122, %v150
    %vm153 = vcmp.eq.s32.totalorder %v52, 4
    %v154 = vcombine.high %v148, %v148
    %v156 = vunpack.c.l.s4 1966171168
    %v157 = vunpack.c.0.s8 %v156
    %v158 = vlaneseq
    %v159 = vshrl.u32 %v158, 7
    %v160 = vsub.s32 %v157, %v159
    %v161 = vrot.slane %v154, %v160
    %v163 = vunpack.c.l.s4 1966171168
    %v164 = vunpack.c.0.s8 %v163
    %v165 = vlaneseq
    %v166 = vshrl.u32 %v165, 7
    %v167 = vsub.s32 %v164, %v166
    %v168 = vrot.slane %v161, %v167
    %v170 = vsel %vm153, %v168, %v141
    %v171 = vrot.slane %v56, 4
    %v173 = vmul.f32 %v144, %v171
    %v175 = vrot.slane %v173, 3
    %v177 = vmul.f32 %v51, %v175
    %v179 = vrot.slane %v177, 5
    %v181 = vadd.f32 %v152, %v179
    %vm182 = vcmp.eq.s32.totalorder %v52, 5
    %v183 = vcombine.high %v177, %v177
    %v185 = vunpack.c.l.s4 1966171168
    %v186 = vunpack.c.0.s8 %v185
    %v187 = vlaneseq
    %v188 = vshrl.u32 %v187, 7
    %v189 = vsub.s32 %v186, %v188
    %v190 = vrot.slane %v183, %v189
    %v191 = vcombine.high %v190, %v190
    %v193 = vunpack.c.l.s4 1966171168
    %v194 = vunpack.c.0.s8 %v193
    %v195 = vlaneseq
    %v196 = vshrl.u32 %v195, 7
    %v197 = vsub.s32 %v194, %v196
    %v198 = vrot.slane %v191, %v197
    %v200 = vsel %vm182, %v198, %v170
    %v201 = vrot.slane %v56, 5
    %v203 = vmul.f32 %v173, %v201
    %v205 = vrot.slane %v203, 2
    %v207 = vmul.f32 %v51, %v205
    %v209 = vrot.slane %v207, 6
    %v211 = vadd.f32 %v181, %v209
    %vm212 = vcmp.eq.s32.totalorder %v52, 6
    %v213 = vcombine.high %v207, %v207
    %v215 = vunpack.c.l.s4 1966171168
    %v216 = vunpack.c.0.s8 %v215
    %v217 = vlaneseq
    %v218 = vshrl.u32 %v217, 7
    %v219 = vsub.s32 %v216, %v218
    %v220 = vrot.slane %v213, %v219
    %v222 = vunpack.c.l.s4 1966171168
    %v223 = vunpack.c.0.s8 %v222
    %v224 = vlaneseq
    %v225 = vshrl.u32 %v224, 7
    %v226 = vsub.s32 %v223, %v225
    %v227 = vrot.slane %v220, %v226
    %v228 = vcombine.high %v227, %v227
    %v230 = vsel %vm212, %v228, %v200
    %v231 = vrot.slane %v56, 6
    %v233 = vmul.f32 %v203, %v231
    %v235 = vrot.slane %v233, 1
    %v237 = vmul.f32 %v51, %v235
    %v239 = vrot.slane %v237, 7
    %v241 = vadd.f32 %v211, %v239
    %vm242 = vcmp.eq.s32.totalorder %v52, 7
    %v243 = vcombine.high %v237, %v237
    %v245 = vunpack.c.l.s4 1966171168
    %v246 = vunpack.c.0.s8 %v245
    %v247 = vlaneseq
    %v248 = vshrl.u32 %v247, 7
    %v249 = vsub.s32 %v246, %v248
    %v250 = vrot.slane %v243, %v249
    %v251 = vcombine.high %v250, %v250
    %v253 = vunpack.c.l.s4 1966171168
    %v254 = vunpack.c.0.s8 %v253
    %v255 = vlaneseq
    %v256 = vshrl.u32 %v255, 7
    %v257 = vsub.s32 %v254, %v256
    %v258 = vrot.slane %v251, %v257
    %v259 = vcombine.high %v258, %v258
    %v261 = vsel %vm242, %v259, %v230
    %v262 = vmul.f32 %v233, %v58
    %v263 = vadd.f32 %v241, %v262
    %v264 = vmax.f32 %v263, 1e-07
    %vm265 = vcmp.eq.s32.totalorder %v52, 8
    %v266 = vsel %vm265, %v262, %v261
    %v267 = vrcp.pop %v264
    %v268 = vmul.f32 %v266, %v267
    %v269 = vmax.f32 %v268, 1e-07
    %v270 = vlog2.pop %v269
    %v271 = vmul.f32 %v270, 0.6931472
    %v272 = vsub.f32 0.0, %v271
    %vm273 = vcmask 122880
    %v274 = vsel %vm273, %v272, 0.0
    %275 = vadd.xlane.f32.xlu0 %v274
    %v276 = vpop.xlane.xlu0 %275
    %v277 = vlaneseq
    %v278 = vand.u32 %v277, 127
    %vm279 = vcmp.eq.s32.totalorder %v278, 0
    %v280 = vsel %vm279, %v276, 0.0
    %281 = vst [vmem:[#allocation2] sm:$0x1] %v280
    // Predicated region
    $region10: #{tpu_custom_call.1} parent=1 // pred_check
      _
    $region11: #{tpu_custom_call.1} parent=1 // pred_check_branch
      %283 = sbr.rel (0) target = $region13
    $region12: #{tpu_custom_call.1} parent=1 // pred_region
      %s285 = ssub.s32 16, 16
      %286 = vsyncadd [#allocation3], %s285
      %s288 = sshll.u32 [#allocation2], 4
      %s289 = int_to_ptr.vmem [resolvable:$true] %s288
      %291 = dma.vmem_to_hbm [thread:$0]  %s289, 16, %s2, [#allocation3]
    $region13: #{tpu_custom_call.1} parent=1 // pred_fallthru
      _
    // Predicated region
    $region14: #{tpu_custom_call.1} parent=1 // pred_check
      _
    $region15: #{tpu_custom_call.1} parent=1 // pred_check_branch
      %293 = sbr.rel (0) target = $region17
    $region16: #{tpu_custom_call.1} parent=1 // pred_region
      %294 = dma.done [#allocation3], 16
    $region17: #{tpu_custom_call.1} parent=1 // pred_fallthru
      _
    %295 = vsyncpa [#allocation3], 1

</llo_original>
